<compile_context>
chip_gen: v5e
topology: v5e:2x2
jax: 0.10.0
libtpu: 0.0.40
codegen_flags: <defaults>
</compile_context>

<pallas_src>
import math

import jax
import jax.numpy as jnp
from jax.experimental import pallas as pl
from jax.experimental.pallas import tpu as pltpu

HIDDEN_SIZES = [128, 64, 32]
BN_EPS = 1e-5
LANE = 128


def _round_up(n, m):
    return ((n + m - 1) // m) * m


def _fused_mlp_kernel(*refs):
    """refs = [x, (w, b) x n_hidden, w_out_row, b_out, out].

    BatchNorm (eval) is pre-folded into (w, b); dropout is identity in eval mode,
    so each hidden layer is dot (MXU) + bias + ReLU (VPU). The final Linear(H, 1)
    is a broadcast-multiply + lane reduction instead of an N=1 MXU matmul.
    """
    x_ref = refs[0]
    out_ref = refs[-1]
    wo_ref, bo_ref = refs[-3], refs[-2]

    h = x_ref[...]
    n_hidden = (len(refs) - 4) // 2
    idx = 1
    for _ in range(n_hidden):
        w_ref, b_ref = refs[idx], refs[idx + 1]
        idx += 2
        h = jnp.maximum(
            jnp.dot(h, w_ref[...], preferred_element_type=jnp.float32) + b_ref[...],
            0.0,
        )
    out_ref[...] = (
        jnp.sum(h * wo_ref[...], axis=-1, keepdims=True) + bo_ref[...]
    ).astype(out_ref.dtype)


def prepare_params(params):
    """One-time parameter prep (call at parameter load, NOT per forward):
      1) fold eval-mode BatchNorm into Linear:  W' = W * gamma*rsqrt(var+eps),
         b' = (b - mean) * gamma*rsqrt(var+eps) + beta
      2) zero-pad hidden widths up to a multiple of 128 lanes (exact — padded lanes
         stay zero through ReLU and meet zero weight rows in the next layer)
      3) store the final (H, 1) weight as a (1, H) row for the in-kernel lane reduction.
    """
    prepared_hidden = []
    prev_pad = None
    for (w, b, gamma, beta, mean, var) in params["hidden"]:
        scale = gamma * jax.lax.rsqrt(var + BN_EPS)        # (1, h)
        w_f = w * scale                                    # (prev, h)
        b_f = (b - mean) * scale + beta                    # (1, h)
        in_dim, h = w_f.shape
        in_pad = in_dim if prev_pad is None else prev_pad
        h_pad = _round_up(h, LANE)
        w_p = jnp.zeros((in_pad, h_pad), jnp.float32).at[:in_dim, :h].set(w_f)
        b_p = jnp.zeros((1, h_pad), jnp.float32).at[:, :h].set(b_f)
        prepared_hidden.append((w_p, b_p))
        prev_pad = h_pad

    out_w = params["out_w"]                                # (h_last, 1)
    h_last = out_w.shape[0]
    out_w_row = jnp.zeros((1, prev_pad), jnp.float32).at[0, :h_last].set(out_w[:, 0])
    return {
        "hidden": prepared_hidden,
        "out_w_row": out_w_row,
        "out_b": params["out_b"],
    }


def fsoc_forward(x, prepared, *, tile_m=512):
    """Run the fused MLP kernel. x: (B, input_size) f32; prepared = prepare_params(...)."""
    batch, in_features = x.shape
    tm = min(tile_m, batch)
    padded_b = _round_up(batch, tm)
    if padded_b != batch:
        x = jnp.pad(x, ((0, padded_b - batch), (0, 0)))
    grid = (padded_b // tm,)

    weight_arrays = []
    for (w, b) in prepared["hidden"]:
        weight_arrays.extend([w, b])
    weight_arrays.extend([prepared["out_w_row"], prepared["out_b"]])

    # x / out are tiled along the batch axis; weights get constant index_maps so the
    # same (tiny) blocks stay VMEM-resident across all grid steps.
    in_specs = [pl.BlockSpec((tm, in_features), lambda i: (i, 0))]
    in_specs += [pl.BlockSpec(a.shape, lambda i: (0, 0)) for a in weight_arrays]
    out_spec = pl.BlockSpec((tm, 1), lambda i: (i, 0))

    # Advisory cost estimate for XLA's scheduler.
    flops = 0
    last_h = in_features
    for (w, _) in prepared["hidden"]:
        flops += 2 * padded_b * w.shape[0] * w.shape[1]
        last_h = w.shape[1]
    flops += 2 * padded_b * last_h  # final lane reduction
    bytes_accessed = 4 * (x.size + padded_b + sum(a.size for a in weight_arrays))
    cost = pl.CostEstimate(flops=flops, transcendentals=0, bytes_accessed=bytes_accessed)

    out = pl.pallas_call(
        _fused_mlp_kernel,
        out_shape=jax.ShapeDtypeStruct((padded_b, 1), jnp.float32),
        grid=grid,
        in_specs=in_specs,
        out_specs=out_spec,
        compiler_params=pltpu.CompilerParams(dimension_semantics=("parallel",)),
        cost_estimate=cost,
    )(x, *weight_arrays)
    return out[:batch]


def init_params(key, input_size):
    """Deterministic init matching the PyTorch module's __init__:
    Xavier-uniform Linear weights, zero biases, BN gamma=1/beta=0, running mean=0/var=1."""
    params = {"hidden": []}
    prev = input_size
    for h in HIDDEN_SIZES:
        key, sub = jax.random.split(key)
        bound = math.sqrt(6.0 / (prev + h))
        w = jax.random.uniform(sub, (prev, h), jnp.float32, -bound, bound)
        b = jnp.zeros((1, h), jnp.float32)
        gamma = jnp.ones((1, h), jnp.float32)
        beta = jnp.zeros((1, h), jnp.float32)
        r_mean = jnp.zeros((1, h), jnp.float32)
        r_var = jnp.ones((1, h), jnp.float32)
        params["hidden"].append((w, b, gamma, beta, r_mean, r_var))
        prev = h
    key, sub = jax.random.split(key)
    bound = math.sqrt(6.0 / (prev + 1))
    params["out_w"] = jax.random.uniform(sub, (prev, 1), jnp.float32, -bound, bound)
    params["out_b"] = jnp.zeros((1, 1), jnp.float32)
    return params


def _reference_forward(x, params):
    """Plain-JAX reference (unfolded / unpadded parameters) for correctness check."""
    h = x
    for (w, b, g, be, m, v) in params["hidden"]:
        h = h @ w + b
        h = (h - m) / jnp.sqrt(v + BN_EPS) * g + be
        h = jnp.maximum(h, 0.0)
    return h @ params["out_w"] + params["out_b"]


if __name__ == "__main__":
    key = jax.random.PRNGKey(0)
    batch, input_size = 8, 16

    key, k_x, k_p = jax.random.split(key, 3)
    x = jax.random.normal(k_x, (batch, input_size), jnp.float32)
    params = init_params(k_p, input_size)
    prepared = prepare_params(params)  # one-time fold + pad (not per call)

    out = fsoc_forward(x, prepared)
    out = jax.block_until_ready(out)

    ref = _reference_forward(x, params)
    assert out.shape == (batch, 1), out.shape
    assert jnp.allclose(out, ref, atol=1e-4, rtol=1e-4), (out, ref)

    print("KERNEL_OK")
</pallas_src>

<mosaic_0001>
module attributes {stable_mosaic.version = 11 : i64} {
  func.func @_fused_mlp_kernel(%arg0: i32, %arg1: memref<8x16xf32, #tpu.memory_space<vmem>>, %arg2: memref<16x128xf32, #tpu.memory_space<vmem>>, %arg3: memref<1x128xf32, #tpu.memory_space<vmem>>, %arg4: memref<128x128xf32, #tpu.memory_space<vmem>>, %arg5: memref<1x128xf32, #tpu.memory_space<vmem>>, %arg6: memref<128x128xf32, #tpu.memory_space<vmem>>, %arg7: memref<1x128xf32, #tpu.memory_space<vmem>>, %arg8: memref<1x128xf32, #tpu.memory_space<vmem>>, %arg9: memref<1x1xf32, #tpu.memory_space<vmem>>, %arg10: memref<8x1xf32, #tpu.memory_space<vmem>>) attributes {dimension_semantics = [#tpu.dimension_semantics<parallel>], iteration_bounds = array<i64: 1>, scalar_prefetch = 0 : i64, scratch_operands = 0 : i64, tpu.core_type = #tpu.core_type<tc>, window_params = [{transform_indices = @transform_0, window_bounds = array<i64: 8, 16>}, {pipeline_mode = #tpu.pipeline_mode<synchronous>, transform_indices = @transform_1, window_bounds = array<i64: 16, 128>}, {pipeline_mode = #tpu.pipeline_mode<synchronous>, transform_indices = @transform_2, window_bounds = array<i64: 1, 128>}, {pipeline_mode = #tpu.pipeline_mode<synchronous>, transform_indices = @transform_3, window_bounds = array<i64: 128, 128>}, {pipeline_mode = #tpu.pipeline_mode<synchronous>, transform_indices = @transform_4, window_bounds = array<i64: 1, 128>}, {pipeline_mode = #tpu.pipeline_mode<synchronous>, transform_indices = @transform_5, window_bounds = array<i64: 128, 128>}, {pipeline_mode = #tpu.pipeline_mode<synchronous>, transform_indices = @transform_6, window_bounds = array<i64: 1, 128>}, {pipeline_mode = #tpu.pipeline_mode<synchronous>, transform_indices = @transform_7, window_bounds = array<i64: 1, 128>}, {pipeline_mode = #tpu.pipeline_mode<synchronous>, transform_indices = @transform_8, window_bounds = array<i64: 1, 1>}, {transform_indices = @transform_9, window_bounds = array<i64: 8, 1>}]} {
    %c0 = arith.constant 0 : index
    %c0_0 = arith.constant 0 : index
    %0 = vector.load %arg1[%c0, %c0_0] : memref<8x16xf32, #tpu.memory_space<vmem>>, vector<8x16xf32>
    %c0_1 = arith.constant 0 : index
    %c0_2 = arith.constant 0 : index
    %1 = vector.load %arg2[%c0_1, %c0_2] : memref<16x128xf32, #tpu.memory_space<vmem>>, vector<16x128xf32>
    %cst = arith.constant dense<0.000000e+00> : vector<8x128xf32>
    %2 = tpu.matmul %0, %1, %cst {dimension_numbers = #tpu.dot_dimension_numbers<[1], [0], [0], [1], [0, 0, 1, 1], [], []>} : vector<8x16xf32>, vector<16x128xf32>, vector<8x128xf32> -> vector<8x128xf32>
    %c0_3 = arith.constant 0 : index
    %c0_4 = arith.constant 0 : index
    %3 = vector.load %arg3[%c0_3, %c0_4] : memref<1x128xf32, #tpu.memory_space<vmem>>, vector<1x128xf32>
    %4 = vector.broadcast %3 : vector<1x128xf32> to vector<8x128xf32>
    %5 = arith.addf %2, %4 : vector<8x128xf32>
    %cst_5 = arith.constant 0.000000e+00 : f32
    %6 = vector.broadcast %cst_5 : f32 to vector<8x128xf32>
    %7 = arith.maximumf %5, %6 : vector<8x128xf32>
    %c0_6 = arith.constant 0 : index
    %c0_7 = arith.constant 0 : index
    %8 = vector.load %arg4[%c0_6, %c0_7] : memref<128x128xf32, #tpu.memory_space<vmem>>, vector<128x128xf32>
    %cst_8 = arith.constant dense<0.000000e+00> : vector<8x128xf32>
    %9 = tpu.matmul %7, %8, %cst_8 {dimension_numbers = #tpu.dot_dimension_numbers<[1], [0], [0], [1], [0, 0, 1, 1], [], []>} : vector<8x128xf32>, vector<128x128xf32>, vector<8x128xf32> -> vector<8x128xf32>
    %c0_9 = arith.constant 0 : index
    %c0_10 = arith.constant 0 : index
    %10 = vector.load %arg5[%c0_9, %c0_10] : memref<1x128xf32, #tpu.memory_space<vmem>>, vector<1x128xf32>
    %11 = vector.broadcast %10 : vector<1x128xf32> to vector<8x128xf32>
    %12 = arith.addf %9, %11 : vector<8x128xf32>
    %cst_11 = arith.constant 0.000000e+00 : f32
    %13 = vector.broadcast %cst_11 : f32 to vector<8x128xf32>
    %14 = arith.maximumf %12, %13 : vector<8x128xf32>
    %c0_12 = arith.constant 0 : index
    %c0_13 = arith.constant 0 : index
    %15 = vector.load %arg6[%c0_12, %c0_13] : memref<128x128xf32, #tpu.memory_space<vmem>>, vector<128x128xf32>
    %cst_14 = arith.constant dense<0.000000e+00> : vector<8x128xf32>
    %16 = tpu.matmul %14, %15, %cst_14 {dimension_numbers = #tpu.dot_dimension_numbers<[1], [0], [0], [1], [0, 0, 1, 1], [], []>} : vector<8x128xf32>, vector<128x128xf32>, vector<8x128xf32> -> vector<8x128xf32>
    %c0_15 = arith.constant 0 : index
    %c0_16 = arith.constant 0 : index
    %17 = vector.load %arg7[%c0_15, %c0_16] : memref<1x128xf32, #tpu.memory_space<vmem>>, vector<1x128xf32>
    %18 = vector.broadcast %17 : vector<1x128xf32> to vector<8x128xf32>
    %19 = arith.addf %16, %18 : vector<8x128xf32>
    %cst_17 = arith.constant 0.000000e+00 : f32
    %20 = vector.broadcast %cst_17 : f32 to vector<8x128xf32>
    %21 = arith.maximumf %19, %20 : vector<8x128xf32>
    %c0_18 = arith.constant 0 : index
    %c0_19 = arith.constant 0 : index
    %22 = vector.load %arg8[%c0_18, %c0_19] : memref<1x128xf32, #tpu.memory_space<vmem>>, vector<1x128xf32>
    %23 = vector.broadcast %22 : vector<1x128xf32> to vector<8x128xf32>
    %24 = arith.mulf %21, %23 : vector<8x128xf32>
    %cst_20 = arith.constant dense<0.000000e+00> : vector<8xf32>
    %25 = vector.multi_reduction <add>, %24, %cst_20 [1] : vector<8x128xf32> to vector<8xf32>
    %26 = vector.shape_cast %25 : vector<8xf32> to vector<8x1xf32>
    %c0_21 = arith.constant 0 : index
    %c0_22 = arith.constant 0 : index
    %27 = vector.load %arg9[%c0_21, %c0_22] : memref<1x1xf32, #tpu.memory_space<vmem>>, vector<1x1xf32>
    %28 = vector.broadcast %27 : vector<1x1xf32> to vector<8x1xf32>
    %29 = arith.addf %26, %28 : vector<8x1xf32>
    %c0_23 = arith.constant 0 : index
    %c0_24 = arith.constant 0 : index
    %30 = vector.load %arg10[%c0_23, %c0_24] : memref<8x1xf32, #tpu.memory_space<vmem>>, vector<8x1xf32>
    tpu.vector_store %arg10[%c0_23, %c0_24], %29 {strides = array<i32>} : memref<8x1xf32, #tpu.memory_space<vmem>>, vector<8x1xf32>,
    return
  }
  func.func @transform_0(%arg0: i32) -> (i32, i32) {
    %c0_i32 = arith.constant 0 : i32
    %c0_i32_0 = arith.constant 0 : i32
    return %arg0, %c0_i32 : i32, i32
  }
  func.func @transform_1(%arg0: i32) -> (i32, i32) {
    %c0_i32 = arith.constant 0 : i32
    %c0_i32_0 = arith.constant 0 : i32
    %c0_i32_1 = arith.constant 0 : i32
    return %c0_i32, %c0_i32_0 : i32, i32
  }
  func.func @transform_2(%arg0: i32) -> (i32, i32) {
    %c0_i32 = arith.constant 0 : i32
    %c0_i32_0 = arith.constant 0 : i32
    %c0_i32_1 = arith.constant 0 : i32
    return %c0_i32, %c0_i32_0 : i32, i32
  }
  func.func @transform_3(%arg0: i32) -> (i32, i32) {
    %c0_i32 = arith.constant 0 : i32
    %c0_i32_0 = arith.constant 0 : i32
    %c0_i32_1 = arith.constant 0 : i32
    return %c0_i32, %c0_i32_0 : i32, i32
  }
  func.func @transform_4(%arg0: i32) -> (i32, i32) {
    %c0_i32 = arith.constant 0 : i32
    %c0_i32_0 = arith.constant 0 : i32
    %c0_i32_1 = arith.constant 0 : i32
    return %c0_i32, %c0_i32_0 : i32, i32
  }
  func.func @transform_5(%arg0: i32) -> (i32, i32) {
    %c0_i32 = arith.constant 0 : i32
    %c0_i32_0 = arith.constant 0 : i32
    %c0_i32_1 = arith.constant 0 : i32
    return %c0_i32, %c0_i32_0 : i32, i32
  }
  func.func @transform_6(%arg0: i32) -> (i32, i32) {
    %c0_i32 = arith.constant 0 : i32
    %c0_i32_0 = arith.constant 0 : i32
    %c0_i32_1 = arith.constant 0 : i32
    return %c0_i32, %c0_i32_0 : i32, i32
  }
  func.func @transform_7(%arg0: i32) -> (i32, i32) {
    %c0_i32 = arith.constant 0 : i32
    %c0_i32_0 = arith.constant 0 : i32
    %c0_i32_1 = arith.constant 0 : i32
    return %c0_i32, %c0_i32_0 : i32, i32
  }
  func.func @transform_8(%arg0: i32) -> (i32, i32) {
    %c0_i32 = arith.constant 0 : i32
    %c0_i32_0 = arith.constant 0 : i32
    %c0_i32_1 = arith.constant 0 : i32
    return %c0_i32, %c0_i32_0 : i32, i32
  }
  func.func @transform_9(%arg0: i32) -> (i32, i32) {
    %c0_i32 = arith.constant 0 : i32
    %c0_i32_0 = arith.constant 0 : i32
    return %arg0, %c0_i32 : i32, i32
  }
}

</mosaic_0001>

<llo_original>
// kernel: tpu_custom_call.1
$region0: #{tpu_custom_call.1}
  #allocation0 [shape = 'u32[]', space=smem, size = 0x4, offset = 0x4, fixed_abs, tag = 'smem constant byte address 0x4 - core index']
  #allocation1 [shape = 'u32[72,128]{1,0:T(1,128)}', space=vmem, size = 0x9000, scoped, tag = 'internal scratch']
  #allocation2 [shape = 'f32[1,1]{1,0:T(1,128)S(1)}', space=vmem, size = 0x200, scoped, tag = 'scoped memory for tpu_custom_call.1']
  %s0 = inlined_call_operand.hbm [shape: f32[8,16], index: 0, kind: input, shape index: {}]
  %s1 = inlined_call_operand.hbm [shape: f32[16,128], index: 1, kind: input, shape index: {}]
  %s2 = inlined_call_operand.vmem [shape: f32[1,128], index: 2, kind: input, shape index: {}]
  %s3 = inlined_call_operand.hbm [shape: f32[128,128], index: 3, kind: input, shape index: {}]
  %s4 = inlined_call_operand.vmem [shape: f32[1,128], index: 4, kind: input, shape index: {}]
  %s5 = inlined_call_operand.hbm [shape: f32[128,128], index: 5, kind: input, shape index: {}]
  %s6 = inlined_call_operand.vmem [shape: f32[1,128], index: 6, kind: input, shape index: {}]
  %s7 = inlined_call_operand.vmem [shape: f32[1,128], index: 7, kind: input, shape index: {}]
  %s8 = inlined_call_operand.<no memory space> [shape: f32[1,1], index: 8, kind: input, shape index: {}]
  %s9 = inlined_call_operand.vmem [shape: f32[8,1], index: 9, kind: output, shape index: {}]
  %s10 = sld [smem:[#allocation0]]
  $region62: #{tpu_custom_call.1} parent=0
    _
  %s12 = ssub.s32 1, %s10
  %s13 = scalar_select 0, %s12, %s10
  %v14 = vstv %s8
  %15 = vst [vmem:[#allocation2] sm:$0x1] %v14
  $region1: #{tpu_custom_call.1} parent=0
    #allocation3 [shape = 'u8[4096]{0}', space=vmem, size = 0x1000, scoped, tag = 'input window, operand 0, single buffered']
    #allocation4 [shape = 's32[1]{0}', space=sflag, size = 0x4, scoped, tag = 'scoped memory for tpu_custom_call.1']
    #allocation5 [shape = 'u8[8192]{0}', space=vmem, size = 0x2000, scoped, tag = 'input window, operand 1, single buffered']
    #allocation6 [shape = 's32[1]{0}', space=sflag, size = 0x4, scoped, tag = 'scoped memory for tpu_custom_call.1']
    #allocation7 [shape = 'u8[65536]{0}', space=vmem, size = 0x10000, scoped, tag = 'input window, operand 3, single buffered']
    #allocation8 [shape = 'u8[65536]{0}', space=vmem, size = 0x10000, scoped, tag = 'input window, operand 5, single buffered']
    #allocation9 [shape = 's32[1]{0}', space=sflag, size = 0x4, scoped, tag = 'scoped memory for tpu_custom_call.1']
    %16 = vsyncpa [#allocation4], 0
    %17 = vsyncpa [#allocation6], 0
    %18 = vsyncpa [#allocation9], 0
    // Predicated region
    $region2: #{tpu_custom_call.1} parent=1 // pred_check
      _
    $region3: #{tpu_custom_call.1} parent=1 // pred_check_branch
      %20 = sbr.rel (0) target = $region5
    $region4: #{tpu_custom_call.1} parent=1 // pred_region
      %22 = vsyncadd [#allocation4], 0
      %s24 = sshll.u32 %s0, 4
      %s25 = int_to_ptr.hbm [resolvable:$true] %s24
      %s26 = sshll.u32 [#allocation3], 4
      %s27 = int_to_ptr.vmem [resolvable:$true] %s26
      %29 = dma.hbm_to_vmem [thread:$0]  %s25, 128, %s27, [#allocation4]
    $region5: #{tpu_custom_call.1} parent=1 // pred_fallthru
      _
    // Predicated region
    $region6: #{tpu_custom_call.1} parent=1 // pred_check
      _
    $region7: #{tpu_custom_call.1} parent=1 // pred_check_branch
      %31 = sbr.rel (0) target = $region9
    $region8: #{tpu_custom_call.1} parent=1 // pred_region
      %33 = vsyncadd [#allocation6], 0
      %s34 = sshll.u32 %s1, 4
      %s35 = int_to_ptr.hbm [resolvable:$true] %s34
      %s36 = sshll.u32 [#allocation5], 4
      %s37 = int_to_ptr.vmem [resolvable:$true] %s36
      %42 = dma.hbm_to_vmem [thread:$0]  %s35, 256, %s37, [#allocation6], 128, 128, 8
    $region9: #{tpu_custom_call.1} parent=1 // pred_fallthru
      _
    // Predicated region
    $region10: #{tpu_custom_call.1} parent=1 // pred_check
      _
    $region11: #{tpu_custom_call.1} parent=1 // pred_check_branch
      %44 = sbr.rel (0) target = $region13
    $region12: #{tpu_custom_call.1} parent=1 // pred_region
      _
    $region13: #{tpu_custom_call.1} parent=1 // pred_fallthru
      _
    // Predicated region
    $region14: #{tpu_custom_call.1} parent=1 // pred_check
      _
    $region15: #{tpu_custom_call.1} parent=1 // pred_check_branch
      %46 = sbr.rel (0) target = $region17
    $region16: #{tpu_custom_call.1} parent=1 // pred_region
      %48 = vsyncadd [#allocation6], 0
      %s49 = sshll.u32 %s3, 4
      %s50 = int_to_ptr.hbm [resolvable:$true] %s49
      %s51 = sshll.u32 [#allocation7], 4
      %s52 = int_to_ptr.vmem [resolvable:$true] %s51
      %57 = dma.hbm_to_vmem [thread:$0]  %s50, 2048, %s52, [#allocation6], 128, 128, 8
    $region17: #{tpu_custom_call.1} parent=1 // pred_fallthru
      _
    // Predicated region
    $region18: #{tpu_custom_call.1} parent=1 // pred_check
      _
    $region19: #{tpu_custom_call.1} parent=1 // pred_check_branch
      %59 = sbr.rel (0) target = $region21
    $region20: #{tpu_custom_call.1} parent=1 // pred_region
      _
    $region21: #{tpu_custom_call.1} parent=1 // pred_fallthru
      _
    // Predicated region
    $region22: #{tpu_custom_call.1} parent=1 // pred_check
      _
    $region23: #{tpu_custom_call.1} parent=1 // pred_check_branch
      %61 = sbr.rel (0) target = $region25
    $region24: #{tpu_custom_call.1} parent=1 // pred_region
      %63 = vsyncadd [#allocation9], 0
      %s64 = sshll.u32 %s5, 4
      %s65 = int_to_ptr.hbm [resolvable:$true] %s64
      %s66 = sshll.u32 [#allocation8], 4
      %s67 = int_to_ptr.vmem [resolvable:$true] %s66
      %72 = dma.hbm_to_vmem [thread:$0]  %s65, 2048, %s67, [#allocation9], 128, 128, 8
    $region25: #{tpu_custom_call.1} parent=1 // pred_fallthru
      _
    // Predicated region
    $region26: #{tpu_custom_call.1} parent=1 // pred_check
      _
    $region27: #{tpu_custom_call.1} parent=1 // pred_check_branch
      %74 = sbr.rel (0) target = $region29
    $region28: #{tpu_custom_call.1} parent=1 // pred_region
      _
    $region29: #{tpu_custom_call.1} parent=1 // pred_fallthru
      _
    // Predicated region
    $region30: #{tpu_custom_call.1} parent=1 // pred_check
      _
    $region31: #{tpu_custom_call.1} parent=1 // pred_check_branch
      %76 = sbr.rel (0) target = $region33
    $region32: #{tpu_custom_call.1} parent=1 // pred_region
      _
    $region33: #{tpu_custom_call.1} parent=1 // pred_fallthru
      _
    // Predicated region
    $region34: #{tpu_custom_call.1} parent=1 // pred_check
      _
    $region35: #{tpu_custom_call.1} parent=1 // pred_check_branch
      %78 = sbr.rel (0) target = $region37
    $region36: #{tpu_custom_call.1} parent=1 // pred_region
      _
    $region37: #{tpu_custom_call.1} parent=1 // pred_fallthru
      _
    // Predicated region
    $region38: #{tpu_custom_call.1} parent=1 // pred_check
      _
    $region39: #{tpu_custom_call.1} parent=1 // pred_check_branch
      %80 = sbr.rel (0) target = $region41
    $region40: #{tpu_custom_call.1} parent=1 // pred_region
      %82 = dma.done [#allocation4], 128
    $region41: #{tpu_custom_call.1} parent=1 // pred_fallthru
      _
    // Predicated region
    $region42: #{tpu_custom_call.1} parent=1 // pred_check
      _
    $region43: #{tpu_custom_call.1} parent=1 // pred_check_branch
      %84 = sbr.rel (0) target = $region45
    $region44: #{tpu_custom_call.1} parent=1 // pred_region
      %86 = dma.done [#allocation6], 256
    $region45: #{tpu_custom_call.1} parent=1 // pred_fallthru
      _
    // Predicated region
    $region46: #{tpu_custom_call.1} parent=1 // pred_check
      _
    $region47: #{tpu_custom_call.1} parent=1 // pred_check_branch
      %88 = sbr.rel (0) target = $region49
    $region48: #{tpu_custom_call.1} parent=1 // pred_region
      %90 = dma.done [#allocation6], 2048
    $region49: #{tpu_custom_call.1} parent=1 // pred_fallthru
      _
    // Predicated region
    $region50: #{tpu_custom_call.1} parent=1 // pred_check
      _
    $region51: #{tpu_custom_call.1} parent=1 // pred_check_branch
      %92 = sbr.rel (0) target = $region53
    $region52: #{tpu_custom_call.1} parent=1 // pred_region
      %94 = dma.done [#allocation9], 2048
    $region53: #{tpu_custom_call.1} parent=1 // pred_fallthru
      _
    %v95 = vld [vmem:[#allocation3] sm:$0xff]
    %v96 = vld [vmem:[#allocation5] sm:$0xff]
    %v97 = vld [vmem:[#allocation5 + $0x8] sm:$0xff]
    %v98 = vld [vmem:[%s2] sm:$0x1]
    %v100 = vperm.slane %v98, 0
    %vm102 = vcmask 130048
    %v104 = vsel %vm102, %v95, 0
    %106 = vmatpush.msra.mxu0 0.0
    %107 = vmatpush.msra.mxu0 0.0
    %108 = vmatpush.msra.mxu0 0.0
    %109 = vmatpush.msra.mxu0 0.0
    %110 = vmatpush.msra.mxu0 0.0
    %111 = vmatpush.msra.mxu0 0.0
    %112 = vmatpush.msra.mxu0 0.0
    %113 = vmatpush.msra.mxu0 0.0
    %114 = vmatpush.msra.mxu0 0.0
    %115 = vmatpush.msra.mxu0 0.0
    %116 = vmatpush.msra.mxu0 0.0
    %117 = vmatpush.msra.mxu0 0.0
    %118 = vmatpush.msra.mxu0 0.0
    %119 = vmatpush.msra.mxu0 0.0
    %120 = vmatpush.msra.mxu0 %v97
    %121 = vmatpush.msra.mxu0 %v96
    %122 = vmatmul.f32.gmra.mxu0 %v104
    %v123 = vpop.f32.mrf.mxu0
    %v124 = vadd.f32 %v100, %v123
    %125 = vdwg.mxu0
    %v126 = vmax.f32 %v124, 0.0
    %v127 = vld [vmem:[#allocation7] sm:$0xff]
    %v128 = vld [vmem:[#allocation7 + $0x8] sm:$0xff]
    %v129 = vld [vmem:[#allocation7 + $0x10] sm:$0xff]
    %v130 = vld [vmem:[#allocation7 + $0x18] sm:$0xff]
    %v131 = vld [vmem:[#allocation7 + $0x20] sm:$0xff]
    %v132 = vld [vmem:[#allocation7 + $0x28] sm:$0xff]
    %v133 = vld [vmem:[#allocation7 + $0x30] sm:$0xff]
    %v134 = vld [vmem:[#allocation7 + $0x38] sm:$0xff]
    %v135 = vld [vmem:[#allocation7 + $0x40] sm:$0xff]
    %v136 = vld [vmem:[#allocation7 + $0x48] sm:$0xff]
    %v137 = vld [vmem:[#allocation7 + $0x50] sm:$0xff]
    %v138 = vld [vmem:[#allocation7 + $0x58] sm:$0xff]
    %v139 = vld [vmem:[#allocation7 + $0x60] sm:$0xff]
    %v140 = vld [vmem:[#allocation7 + $0x68] sm:$0xff]
    %v141 = vld [vmem:[#allocation7 + $0x70] sm:$0xff]
    %v142 = vld [vmem:[#allocation7 + $0x78] sm:$0xff]
    %v143 = vld [vmem:[%s4] sm:$0x1]
    %v145 = vperm.slane %v143, 0
    %147 = vmatpush.msra.mxu0 %v142
    %148 = vmatpush.msra.mxu0 %v141
    %149 = vmatpush.msra.mxu0 %v140
    %150 = vmatpush.msra.mxu0 %v139
    %151 = vmatpush.msra.mxu0 %v138
    %152 = vmatpush.msra.mxu0 %v137
    %153 = vmatpush.msra.mxu0 %v136
    %154 = vmatpush.msra.mxu0 %v135
    %155 = vmatpush.msra.mxu0 %v134
    %156 = vmatpush.msra.mxu0 %v133
    %157 = vmatpush.msra.mxu0 %v132
    %158 = vmatpush.msra.mxu0 %v131
    %159 = vmatpush.msra.mxu0 %v130
    %160 = vmatpush.msra.mxu0 %v129
    %161 = vmatpush.msra.mxu0 %v128
    %162 = vmatpush.msra.mxu0 %v127
    %163 = vmatmul.f32.gmra.mxu0 %v126
    %v164 = vpop.f32.mrf.mxu0
    %v165 = vadd.f32 %v145, %v164
    %166 = vdwg.mxu0
    %v167 = vmax.f32 %v165, 0.0
    %v168 = vld [vmem:[#allocation8] sm:$0xff]
    %v169 = vld [vmem:[#allocation8 + $0x8] sm:$0xff]
    %v170 = vld [vmem:[#allocation8 + $0x10] sm:$0xff]
    %v171 = vld [vmem:[#allocation8 + $0x18] sm:$0xff]
    %v172 = vld [vmem:[#allocation8 + $0x20] sm:$0xff]
    %v173 = vld [vmem:[#allocation8 + $0x28] sm:$0xff]
    %v174 = vld [vmem:[#allocation8 + $0x30] sm:$0xff]
    %v175 = vld [vmem:[#allocation8 + $0x38] sm:$0xff]
    %v176 = vld [vmem:[#allocation8 + $0x40] sm:$0xff]
    %v177 = vld [vmem:[#allocation8 + $0x48] sm:$0xff]
    %v178 = vld [vmem:[#allocation8 + $0x50] sm:$0xff]
    %v179 = vld [vmem:[#allocation8 + $0x58] sm:$0xff]
    %v180 = vld [vmem:[#allocation8 + $0x60] sm:$0xff]
    %v181 = vld [vmem:[#allocation8 + $0x68] sm:$0xff]
    %v182 = vld [vmem:[#allocation8 + $0x70] sm:$0xff]
    %v183 = vld [vmem:[#allocation8 + $0x78] sm:$0xff]
    %v184 = vld [vmem:[%s6] sm:$0x1]
    %v186 = vperm.slane %v184, 0
    %188 = vmatpush.msra.mxu0 %v183
    %189 = vmatpush.msra.mxu0 %v182
    %190 = vmatpush.msra.mxu0 %v181
    %191 = vmatpush.msra.mxu0 %v180
    %192 = vmatpush.msra.mxu0 %v179
    %193 = vmatpush.msra.mxu0 %v178
    %194 = vmatpush.msra.mxu0 %v177
    %195 = vmatpush.msra.mxu0 %v176
    %196 = vmatpush.msra.mxu0 %v175
    %197 = vmatpush.msra.mxu0 %v174
    %198 = vmatpush.msra.mxu0 %v173
    %199 = vmatpush.msra.mxu0 %v172
    %200 = vmatpush.msra.mxu0 %v171
    %201 = vmatpush.msra.mxu0 %v170
    %202 = vmatpush.msra.mxu0 %v169
    %203 = vmatpush.msra.mxu0 %v168
    %204 = vmatmul.f32.gmra.mxu0 %v167
    %v205 = vpop.f32.mrf.mxu0
    %v206 = vadd.f32 %v186, %v205
    %207 = vdwg.mxu0
    %v208 = vmax.f32 %v206, 0.0
    %v209 = vld [vmem:[%s7] sm:$0x1]
    %v211 = vperm.slane %v209, 0
    %v213 = vmul.f32 %v208, %v211
    %214 = vadd.xlane.f32.xlu0 %v213
    %v215 = vpop.xlane.xlu0 %214
    %v216 = vld [vmem:[#allocation2] sm:$0x1]
    %v218 = vperm.slane %v216, 0
    %v220 = vadd.f32 %v215, %v218
    %vm221 = vcmask 7168
    %222 = vst.msk [vmem:[%s9] sm:$0xff] %vm221, %v220
    // Predicated region
    $region54: #{tpu_custom_call.1} parent=1 // pred_check
      _
    $region55: #{tpu_custom_call.1} parent=1 // pred_check_branch
      %224 = sbr.rel (0) target = $region57
    $region56: #{tpu_custom_call.1} parent=1 // pred_region
      _
    $region57: #{tpu_custom_call.1} parent=1 // pred_fallthru
      _
    // Predicated region
    $region58: #{tpu_custom_call.1} parent=1 // pred_check
      _
    $region59: #{tpu_custom_call.1} parent=1 // pred_check_branch
      %226 = sbr.rel (0) target = $region61
    $region60: #{tpu_custom_call.1} parent=1 // pred_region
      _
    $region61: #{tpu_custom_call.1} parent=1 // pred_fallthru
      _
    %227 = vsyncpa [#allocation4], 1
    %228 = vsyncpa [#allocation6], 1
    %229 = vsyncpa [#allocation9], 1

</llo_original>
